<compile_context>
chip_gen: v7x
topology: tpu7x:2x2x1
jax: 0.10.0
libtpu: 0.0.40
codegen_flags: <defaults>
</compile_context>

<pallas_src>
import functools

import jax
import jax.numpy as jnp
from jax import lax
from jax.experimental import pallas as pl
from jax.experimental.pallas import tpu as pltpu


def _round_up(x, m):
    return ((x + m - 1) // m) * m


# ----------------------------------------------------------------------------
# Pallas GEMM: bf16 MXU inputs, f32 accumulation, K fully resident in VMEM,
# optional fused per-column sum / sum-of-squares (BatchNorm batch statistics).
# ----------------------------------------------------------------------------
_K_RESIDENT_MAX = 8192   # largest contraction kept fully resident (this model: <=4608)


def _gemm_kernel(a_ref, b_ref, o_ref):
    o_ref[...] = jnp.dot(a_ref[...], b_ref[...],
                         preferred_element_type=jnp.float32).astype(o_ref.dtype)


def _gemm_stats_kernel(a_ref, b_ref, o_ref, st_ref):
    acc = jnp.dot(a_ref[...], b_ref[...], preferred_element_type=jnp.float32)
    o_ref[...] = acc.astype(o_ref.dtype)
    # per-N-column sum and sum-of-squares of this M tile (XLU reduce; MXU slot
    # untouched).  Zero-padded M rows contribute exactly zero.
    st_ref[0] = jnp.concatenate(
        [jnp.sum(acc, axis=0, keepdims=True),
         jnp.sum(acc * acc, axis=0, keepdims=True)], axis=0)


def pallas_gemm(a, b, *, out_dtype=jnp.bfloat16, with_stats=False):
    """(M,K) @ (K,N).  bf16 inputs, f32 accumulation, collapsed (resident) K.

    Returns y[:M,:N] (out_dtype), plus per-column (sum, sum_sq) f32 vectors
    when with_stats=True.
    """
    m, k = a.shape
    k2, n = b.shape
    assert k == k2, (a.shape, b.shape)
    if k > _K_RESIDENT_MAX:
        # TODO(synk): add a K-tiled reduction variant (3D grid + f32 VMEM
        # accumulator) for contractions larger than ~8K; unused by this model.
        raise NotImplementedError(f"contraction dim {k} > {_K_RESIDENT_MAX}")

    a = a.astype(jnp.bfloat16)
    b = b.astype(jnp.bfloat16)

    # ---- M tiling: biggest tile that divides the 8-aligned M -------------
    mp8 = _round_up(m, 8)
    tm = next(c for c in (512, 256, 128, 64, 32, 16, 8) if mp8 % c == 0)
    if tm < 128 and mp8 >= 4096:
        tm = 512                      # accept edge padding over tiny tiles
    mp = _round_up(m, tm)
    grid_m = mp // tm

    # ---- N tiling: lane-dense 128-multiples; full-dim block if N < 128 ---
    if n % 128 == 0 or n < 128:
        np_ = n
    else:
        np_ = _round_up(n, 128)
    if np_ % 128 == 0:
        tn = 128
        for c in (512, 256, 128):
            # if M has a single tile, keep >=2 N blocks so both v7x cores work
            if np_ % c == 0 and (np_ // c >= 2 or grid_m > 1):
                tn = c
                break
    else:
        tn = np_                      # e.g. 64-channel stem: full-dim block
    grid_n = np_ // tn

    if mp != m:
        a = jnp.pad(a, ((0, mp - m), (0, 0)))     # zero rows: stats-neutral
    if np_ != n:
        b = jnp.pad(b, ((0, 0), (0, np_ - n)))

    out_bytes = jnp.dtype(out_dtype).itemsize
    cost = pl.CostEstimate(
        flops=2 * mp * np_ * k, transcendentals=0,
        bytes_accessed=mp * k * 2 + k * np_ * 2 + mp * np_ * out_bytes)

    in_specs = [pl.BlockSpec((tm, k), lambda i, j: (i, 0)),
                pl.BlockSpec((k, tn), lambda i, j: (0, j))]
    if with_stats:
        kernel = _gemm_stats_kernel
        out_shape = (jax.ShapeDtypeStruct((mp, np_), out_dtype),
                     jax.ShapeDtypeStruct((grid_m, 2, np_), jnp.float32))
        out_specs = (pl.BlockSpec((tm, tn), lambda i, j: (i, j)),
                     pl.BlockSpec((1, 2, tn), lambda i, j: (i, 0, j)))
    else:
        kernel = _gemm_kernel
        out_shape = jax.ShapeDtypeStruct((mp, np_), out_dtype)
        out_specs = pl.BlockSpec((tm, tn), lambda i, j: (i, j))

    res = pl.pallas_call(
        kernel,
        out_shape=out_shape,
        grid_spec=pltpu.PrefetchScalarGridSpec(
            num_scalar_prefetch=0,
            grid=(grid_m, grid_n),
            in_specs=in_specs,
            out_specs=out_specs),
        compiler_params=pltpu.CompilerParams(
            dimension_semantics=("parallel", "parallel"),
            vmem_limit_bytes=48 * 1024 * 1024),
        cost_estimate=cost,
    )(a, b)

    if with_stats:
        y, st = res
        return (y[:m, :n],
                jnp.sum(st[:, 0, :n], axis=0),
                jnp.sum(st[:, 1, :n], axis=0))
    return res[:m, :n]


# ----------------------------------------------------------------------------
# Conv (im2col -> Pallas GEMM, NHWC, bf16 end-to-end) + fused-stats BatchNorm
# ----------------------------------------------------------------------------
def conv2d(x, w, *, stride=1, padding=0):
    """x: (B,H,W,C) bf16 NHWC; w: (O,C,kh,kw) PyTorch layout, no bias.

    Returns (y, col_sum, col_sumsq): y is (B,Ho,Wo,O) bf16; the sums (over
    B*Ho*Wo, per output channel) feed training-mode BatchNorm for free.
    """
    bsz = x.shape[0]
    o, c, kh, kw = w.shape
    if kh == 1 and kw == 1 and padding == 0:
        xs = x[:, ::stride, ::stride, :] if stride > 1 else x
        _, ho, wo, _ = xs.shape
        patches = xs.reshape(bsz * ho * wo, c)
    else:
        # Cast already done by caller (x is bf16): the 9x-expanded im2col
        # tensor is materialized exactly once, in bf16, feature-last with
        # channel-major (C,kh,kw) ordering matching w.reshape(O, C*kh*kw).
        pats = lax.conv_general_dilated_patches(
            x, (kh, kw), (stride, stride),
            [(padding, padding), (padding, padding)],
            dimension_numbers=("NHWC", "HWIO", "NHWC"))
        _, ho, wo, kdim = pats.shape
        patches = pats.reshape(bsz * ho * wo, kdim)
    wmat = jnp.transpose(w.reshape(o, c * kh * kw))          # (C*kh*kw, O)
    y, s, q = pallas_gemm(patches, wmat, out_dtype=jnp.bfloat16,
                          with_stats=True)
    return y.reshape(bsz, ho, wo, o), s, q


def _moments(col_sum, col_sq, count):
    mean = col_sum / count
    var = jnp.maximum(col_sq / count - mean * mean, 0.0)     # biased (train)
    return mean, var


def bn_act(y, col_sum, col_sq, gamma, beta, *, residual=None, relu=True,
           eps=1e-5):
    """Training-mode BatchNorm (stats from the fused GEMM sums) + optional
    residual add + optional ReLU as ONE elementwise pass (XLA fuses the
    scale/shift/add/relu/cast into a single HBM read+write of y)."""
    count = y.size // y.shape[-1]
    mean, var = _moments(col_sum, col_sq, float(count))
    scale = gamma * lax.rsqrt(var + eps)
    shift = beta - mean * scale
    out = y.astype(jnp.float32) * scale + shift
    if residual is not None:
        out = out + residual.astype(jnp.float32)
    if relu:
        out = jnp.maximum(out, 0.0)
    return out.astype(jnp.bfloat16)


def maxpool_3x3_s2_p1(x):
    # TODO(synk): plain-JAX glue; a fused BN+ReLU+maxpool Pallas stem kernel
    # is the next step.
    return lax.reduce_window(
        x, jnp.array(-jnp.inf, x.dtype), lax.max,
        window_dimensions=(1, 3, 3, 1), window_strides=(1, 2, 2, 1),
        padding=[(0, 0), (1, 1), (1, 1), (0, 0)])


def basic_block(x, p, stride):
    y1, s1, q1 = conv2d(x, p["conv1_w"], stride=stride, padding=1)
    h = bn_act(y1, s1, q1, p["bn1_g"], p["bn1_b"])
    y2, s2, q2 = conv2d(h, p["conv2_w"], stride=1, padding=1)
    if "down_w" in p:
        yd, sd, qd = conv2d(x, p["down_w"], stride=stride, padding=0)
        identity = bn_act(yd, sd, qd, p["down_bn_g"], p["down_bn_b"],
                          relu=False)
    else:
        identity = x
    return bn_act(y2, s2, q2, p["bn2_g"], p["bn2_b"], residual=identity)


def resnet18_encoder(x_nchw, p):
    x = jnp.transpose(x_nchw, (0, 2, 3, 1)).astype(jnp.bfloat16)   # NHWC, bf16 once
    y, s, q = conv2d(x, p["conv1_w"], stride=2, padding=3)
    x = bn_act(y, s, q, p["bn1_g"], p["bn1_b"])
    x = maxpool_3x3_s2_p1(x)
    for li, stride in ((1, 1), (2, 2), (3, 2), (4, 2)):
        blocks = p[f"layer{li}"]
        x = basic_block(x, blocks[0], stride)
        x = basic_block(x, blocks[1], 1)
    x = jnp.mean(x.astype(jnp.float32), axis=(1, 2))               # global avgpool
    return jnp.maximum(x, 0.0)                                     # ResNetEncoder ReLU


# ----------------------------------------------------------------------------
# depth_embedding: Linear(512->ND, no bias) -> BN1d -> ReLU -> Linear(ND->ND)
# fc1 GEMM supplies the BN1d batch stats; fc2 is automatically tiled over its
# output columns by pallas_gemm (real-size ND=68*64 weight streamed in panels,
# never whole in VMEM -> v7x safe).
# ----------------------------------------------------------------------------
def depth_embedding(feat, p):
    bs = feat.shape[0]
    h1, s, q = pallas_gemm(feat.astype(jnp.bfloat16), p["emb_w1"],
                           out_dtype=jnp.float32, with_stats=True)
    mean, var = _moments(s, q, float(bs))
    scale = p["emb_bn_g"] * lax.rsqrt(var + 1e-5)
    shift = p["emb_bn_b"] - mean * scale
    h = jnp.maximum(h1 * scale + shift, 0.0).astype(jnp.bfloat16)
    y = pallas_gemm(h, p["emb_w2"], out_dtype=jnp.float32)
    return y + p["emb_b2"]


# ----------------------------------------------------------------------------
# Rel-depth tail: 1x1 "depth" conv, pairwise depth diffs, landmark distances,
# exact division.  Tiny (B,N,N) work kept in plain JAX (a dedicated Pallas
# kernel here is dominated by launch overhead and sub-128-lane masked stores).
# TODO(synk): fold the depth matvec into the fc2 GEMM epilogue.
# ----------------------------------------------------------------------------
def rel_depth_map(depth_feat, landmarks, depth_w, num_landmark, dim_feat):
    bs = depth_feat.shape[0]
    df = depth_feat.reshape(bs, dim_feat, num_landmark)       # torch .view
    s = jnp.einsum("bdn,d->bn", df, depth_w)                  # 1x1 conv
    depthdiff = s[:, :, None] - s[:, None, :]
    d = landmarks[:, :, None, :] - landmarks[:, None, :, :]
    lmdist = jnp.sqrt(jnp.sum(d.astype(jnp.float32) ** 2, axis=-1))
    return depthdiff / (lmdist + 1e-4)


# ----------------------------------------------------------------------------
# Full RGB2RelDepth forward
# ----------------------------------------------------------------------------
def rgb2reldepth_forward(face_image, landmarks, params, num_landmark,
                         dim_feat):
    feat = resnet18_encoder(face_image.astype(jnp.float32), params)  # (B,512)
    depth_feat = depth_embedding(feat, params)                       # (B,N*D)
    return rel_depth_map(depth_feat, landmarks, params["depth_w"],
                         num_landmark, dim_feat)                     # (B,N,N)


# ----------------------------------------------------------------------------
# Deterministic parameter initialization (synthetic; no checkpoint load)
# ----------------------------------------------------------------------------
def init_params(key, num_landmark, dim_feat):
    keys = iter(jax.random.split(key, 80))

    def nrm(shape, scale=0.05):
        return scale * jax.random.normal(next(keys), shape, jnp.float32)

    p = {}
    p["conv1_w"] = nrm((64, 3, 7, 7))
    p["bn1_g"] = 1.0 + nrm((64,), 0.1)
    p["bn1_b"] = nrm((64,), 0.1)
    stages = [(64, 64, 1), (64, 128, 2), (128, 256, 2), (256, 512, 2)]
    for li, (cin, cout, stride) in enumerate(stages, start=1):
        blocks = []
        for bi in range(2):
            in_c = cin if bi == 0 else cout
            bp = {
                "conv1_w": nrm((cout, in_c, 3, 3)),
                "bn1_g": 1.0 + nrm((cout,), 0.1),
                "bn1_b": nrm((cout,), 0.1),
                "conv2_w": nrm((cout, cout, 3, 3)),
                "bn2_g": 1.0 + nrm((cout,), 0.1),
                "bn2_b": nrm((cout,), 0.1),
            }
            if bi == 0 and (stride != 1 or in_c != cout):
                bp["down_w"] = nrm((cout, in_c, 1, 1))
                bp["down_bn_g"] = 1.0 + nrm((cout,), 0.1)
                bp["down_bn_b"] = nrm((cout,), 0.1)
            blocks.append(bp)
        p[f"layer{li}"] = blocks

    nd = num_landmark * dim_feat
    p["emb_w1"] = nrm((512, nd))           # Linear1 weight (in, out), no bias
    p["emb_bn_g"] = 1.0 + nrm((nd,), 0.1)
    p["emb_bn_b"] = nrm((nd,), 0.1)
    p["emb_w2"] = nrm((nd, nd))            # Linear2 weight (in, out)
    p["emb_b2"] = nrm((nd,), 0.1)          # Linear2 bias
    p["depth_w"] = nrm((dim_feat,), 0.1)   # 1x1 conv weight (1, D, 1, 1)
    return p


if __name__ == "__main__":
    key = jax.random.PRNGKey(0)
    k_img, k_lm, k_param = jax.random.split(key, 3)

    # small shapes: batch=2, 3x32x32 image, 8 landmarks, 32-dim landmark feat
    bs, h, w = 2, 32, 32
    num_landmark, dim_feat = 8, 32

    face_image = jax.random.normal(k_img, (bs, 3, h, w), jnp.float32)
    landmarks = 32.0 * jax.random.uniform(k_lm, (bs, num_landmark, 2),
                                          jnp.float32)
    params = init_params(k_param, num_landmark, dim_feat)

    # Sanity: Pallas im2col-GEMM conv (channel-major patches, unaligned K=147)
    # matches lax.conv_general_dilated at bf16-level tolerance.
    def stem_conv(img, wconv):
        xx = jnp.transpose(img, (0, 2, 3, 1)).astype(jnp.bfloat16)
        y, _, _ = conv2d(xx, wconv, stride=2, padding=3)
        return y

    got = jax.block_until_ready(jax.jit(stem_conv)(face_image,
                                                   params["conv1_w"]))
    ref = lax.conv_general_dilated(
        jnp.transpose(face_image, (0, 2, 3, 1)),
        jnp.transpose(params["conv1_w"], (2, 3, 1, 0)),
        (2, 2), [(3, 3), (3, 3)], dimension_numbers=("NHWC", "HWIO", "NHWC"))
    rel_err = (jnp.linalg.norm(got.astype(jnp.float32) - ref)
               / (jnp.linalg.norm(ref) + 1e-12))
    assert float(rel_err) < 3e-2, f"stem conv mismatch: rel err {float(rel_err)}"

    fwd = jax.jit(functools.partial(rgb2reldepth_forward,
                                    num_landmark=num_landmark,
                                    dim_feat=dim_feat))
    out = jax.block_until_ready(fwd(face_image, landmarks, params))

    assert out.shape == (bs, num_landmark, num_landmark), out.shape
    assert bool(jnp.all(jnp.isfinite(out)))
    # rel_depth must be antisymmetric (mirrors the asserts in the torch code)
    assert bool(jnp.allclose(out, -jnp.swapaxes(out, 1, 2),
                             rtol=1e-5, atol=1e-5))
    print("KERNEL_OK")
</pallas_src>

<mosaic_0001>
module attributes {stable_mosaic.version = 11 : i64} {
  func.func @_gemm_stats_kernel(%arg0: i32, %arg1: i32, %arg2: memref<512x147xbf16, #tpu.memory_space<vmem>>, %arg3: memref<147x64xbf16, #tpu.memory_space<vmem>>, %arg4: memref<512x64xbf16, #tpu.memory_space<vmem>>, %arg5: memref<1x2x64xf32, #tpu.memory_space<vmem>>) attributes {dimension_semantics = [#tpu.dimension_semantics<parallel>, #tpu.dimension_semantics<parallel>], iteration_bounds = array<i64: 1, 1>, scalar_prefetch = 0 : i64, scratch_operands = 0 : i64, tpu.core_type = #tpu.core_type<tc>, window_params = [{transform_indices = @transform_0, window_bounds = array<i64: 512, 147>}, {transform_indices = @transform_1, window_bounds = array<i64: 147, 64>}, {transform_indices = @transform_2, window_bounds = array<i64: 512, 64>}, {transform_indices = @transform_3, window_bounds = array<i64: 1, 2, 64>}]} {
    %c0 = arith.constant 0 : index
    %c0_0 = arith.constant 0 : index
    %0 = vector.load %arg2[%c0, %c0_0] : memref<512x147xbf16, #tpu.memory_space<vmem>>, vector<512x147xbf16>
    %c0_1 = arith.constant 0 : index
    %c0_2 = arith.constant 0 : index
    %1 = vector.load %arg3[%c0_1, %c0_2] : memref<147x64xbf16, #tpu.memory_space<vmem>>, vector<147x64xbf16>
    %cst = arith.constant dense<0.000000e+00> : vector<512x64xf32>
    %2 = tpu.matmul %0, %1, %cst {dimension_numbers = #tpu.dot_dimension_numbers<[1], [0], [0], [1], [0, 0, 1, 1], [], []>} : vector<512x147xbf16>, vector<147x64xbf16>, vector<512x64xf32> -> vector<512x64xf32>
    %3 = arith.truncf %2 : vector<512x64xf32> to vector<512x64xbf16>
    %c0_3 = arith.constant 0 : index
    %c0_4 = arith.constant 0 : index
    %4 = vector.load %arg4[%c0_3, %c0_4] : memref<512x64xbf16, #tpu.memory_space<vmem>>, vector<512x64xbf16>
    tpu.vector_store %arg4[%c0_3, %c0_4], %3 {strides = array<i32>} : memref<512x64xbf16, #tpu.memory_space<vmem>>, vector<512x64xbf16>,
    %cst_5 = arith.constant dense<0.000000e+00> : vector<64xf32>
    %5 = vector.multi_reduction <add>, %2, %cst_5 [0] : vector<512x64xf32> to vector<64xf32>
    %6 = vector.shape_cast %5 : vector<64xf32> to vector<1x64xf32>
    %7 = arith.mulf %2, %2 : vector<512x64xf32>
    %cst_6 = arith.constant dense<0.000000e+00> : vector<64xf32>
    %8 = vector.multi_reduction <add>, %7, %cst_6 [0] : vector<512x64xf32> to vector<64xf32>
    %9 = vector.shape_cast %8 : vector<64xf32> to vector<1x64xf32>
    %10 = tpu.concatenate %6, %9 in 0 : vector<1x64xf32>, vector<1x64xf32> -> vector<2x64xf32>
    %c0_7 = arith.constant 0 : index
    %c0_8 = arith.constant 0 : index
    %c0_9 = arith.constant 0 : index
    %11 = vector.load %arg5[%c0_7, %c0_8, %c0_9] : memref<1x2x64xf32, #tpu.memory_space<vmem>>, vector<1x2x64xf32>
    %12 = vector.shape_cast %11 : vector<1x2x64xf32> to vector<2x64xf32>
    %13 = vector.shape_cast %10 : vector<2x64xf32> to vector<1x2x64xf32>
    tpu.vector_store %arg5[%c0_7, %c0_8, %c0_9], %13 {strides = array<i32>} : memref<1x2x64xf32, #tpu.memory_space<vmem>>, vector<1x2x64xf32>,
    return
  }
  func.func @transform_0(%arg0: i32, %arg1: i32) -> (i32, i32) {
    %c0_i32 = arith.constant 0 : i32
    %c0_i32_0 = arith.constant 0 : i32
    return %arg0, %c0_i32 : i32, i32
  }
  func.func @transform_1(%arg0: i32, %arg1: i32) -> (i32, i32) {
    %c0_i32 = arith.constant 0 : i32
    %c0_i32_0 = arith.constant 0 : i32
    return %c0_i32, %arg1 : i32, i32
  }
  func.func @transform_2(%arg0: i32, %arg1: i32) -> (i32, i32) {
    %c0_i32 = arith.constant 0 : i32
    return %arg0, %arg1 : i32, i32
  }
  func.func @transform_3(%arg0: i32, %arg1: i32) -> (i32, i32, i32) {
    %c0_i32 = arith.constant 0 : i32
    %c0_i32_0 = arith.constant 0 : i32
    return %arg0, %c0_i32, %arg1 : i32, i32, i32
  }
}

</mosaic_0001>

<llo_original>
// kernel: stem_conv.1
$region0: #{stem_conv.1}
  #allocation0 [shape = 'u32[]', space=smem, size = 0x4, offset = 0x4, fixed_abs, tag = 'smem constant byte address 0x4 - core index']
  #allocation1 [shape = 'u32[144,128]{1,0:T(1,128)}', space=vmem, size = 0x12000, scoped, tag = 'internal scratch']
  %s0 = inlined_call_operand.vmem [shape: bf16[512,147], index: 0, kind: input, shape index: {}]
  %s1 = inlined_call_operand.vmem [shape: bf16[147,64], index: 1, kind: input, shape index: {}]
  %s2 = inlined_call_operand.hbm [shape: bf16[512,64], index: 2, kind: output, shape index: {0}]
  %s3 = inlined_call_operand.hbm [shape: f32[1,2,64], index: 3, kind: output, shape index: {1}]
  %4 = xla_tuple %s2, %s3
  %s5 = sld [smem:[#allocation0]]
  $region26: #{stem_conv.1} parent=0
    _
  %s7 = ssub.s32 1, %s5
  %s8 = scalar_select 0, %s7, %s5
  $region1: #{stem_conv.1} parent=0
    #allocation2 [shape = 'u8[131072]{0}', space=vmem, size = 0x20000, scoped, tag = 'output window, operand 0, single buffered']
    #allocation3 [shape = 's32[1]{0}', space=sflag, size = 0x4, scoped, tag = 'scoped memory for stem_conv.1']
    #allocation4 [shape = 'u8[1024]{0}', space=vmem, size = 0x400, scoped, tag = 'output window, operand 1, single buffered']
    #allocation5 [shape = 's32[1]{0}', space=sflag, size = 0x4, scoped, tag = 'scoped memory for stem_conv.1']
    %9 = vsyncpa [#allocation3], 0
    %10 = vsyncpa [#allocation5], 0
    // Predicated region
    $region2: #{stem_conv.1} parent=1 // pred_check
      _
    $region3: #{stem_conv.1} parent=1 // pred_check_branch
      %12 = sbr.rel (0) target = $region5
    $region4: #{stem_conv.1} parent=1 // pred_region
      _
    $region5: #{stem_conv.1} parent=1 // pred_fallthru
      _
    // Predicated region
    $region6: #{stem_conv.1} parent=1 // pred_check
      _
    $region7: #{stem_conv.1} parent=1 // pred_check_branch
      %14 = sbr.rel (0) target = $region9
    $region8: #{stem_conv.1} parent=1 // pred_region
      _
    $region9: #{stem_conv.1} parent=1 // pred_fallthru
      _
    %v16 = vld [vmem:[%s0] sm:$0xff]
    %v17 = vld [vmem:[%s0 + $0x8] sm:$0xff]
    %v18 = vld [vmem:[%s0 + $0x10] sm:$0xff]
    %v19 = vld [vmem:[%s0 + $0x18] sm:$0xff]
    %v20 = vld [vmem:[%s0 + $0x20] sm:$0xff]
    %v21 = vld [vmem:[%s0 + $0x28] sm:$0xff]
    %v22 = vld [vmem:[%s0 + $0x30] sm:$0xff]
    %v23 = vld [vmem:[%s0 + $0x38] sm:$0xff]
    %v24 = vld [vmem:[%s0 + $0x40] sm:$0xff]
    %v25 = vld [vmem:[%s0 + $0x48] sm:$0xff]
    %v26 = vld [vmem:[%s0 + $0x50] sm:$0xff]
    %v27 = vld [vmem:[%s0 + $0x58] sm:$0xff]
    %v28 = vld [vmem:[%s0 + $0x60] sm:$0xff]
    %v29 = vld [vmem:[%s0 + $0x68] sm:$0xff]
    %v30 = vld [vmem:[%s0 + $0x70] sm:$0xff]
    %v31 = vld [vmem:[%s0 + $0x78] sm:$0xff]
    %v32 = vld [vmem:[%s0 + $0x80] sm:$0xff]
    %v33 = vld [vmem:[%s0 + $0x88] sm:$0xff]
    %v34 = vld [vmem:[%s0 + $0x90] sm:$0xff]
    %v35 = vld [vmem:[%s0 + $0x98] sm:$0xff]
    %v36 = vld [vmem:[%s0 + $0xa0] sm:$0xff]
    %v37 = vld [vmem:[%s0 + $0xa8] sm:$0xff]
    %v38 = vld [vmem:[%s0 + $0xb0] sm:$0xff]
    %v39 = vld [vmem:[%s0 + $0xb8] sm:$0xff]
    %v40 = vld [vmem:[%s0 + $0xc0] sm:$0xff]
    %v41 = vld [vmem:[%s0 + $0xc8] sm:$0xff]
    %v42 = vld [vmem:[%s0 + $0xd0] sm:$0xff]
    %v43 = vld [vmem:[%s0 + $0xd8] sm:$0xff]
    %v44 = vld [vmem:[%s0 + $0xe0] sm:$0xff]
    %v45 = vld [vmem:[%s0 + $0xe8] sm:$0xff]
    %v46 = vld [vmem:[%s0 + $0xf0] sm:$0xff]
    %v47 = vld [vmem:[%s0 + $0xf8] sm:$0xff]
    %v48 = vld [vmem:[%s0 + $0x100] sm:$0xff]
    %v49 = vld [vmem:[%s0 + $0x108] sm:$0xff]
    %v50 = vld [vmem:[%s0 + $0x110] sm:$0xff]
    %v51 = vld [vmem:[%s0 + $0x118] sm:$0xff]
    %v52 = vld [vmem:[%s0 + $0x120] sm:$0xff]
    %v53 = vld [vmem:[%s0 + $0x128] sm:$0xff]
    %v54 = vld [vmem:[%s0 + $0x130] sm:$0xff]
    %v55 = vld [vmem:[%s0 + $0x138] sm:$0xff]
    %v56 = vld [vmem:[%s0 + $0x140] sm:$0xff]
    %v57 = vld [vmem:[%s0 + $0x148] sm:$0xff]
    %v58 = vld [vmem:[%s0 + $0x150] sm:$0xff]
    %v59 = vld [vmem:[%s0 + $0x158] sm:$0xff]
    %v60 = vld [vmem:[%s0 + $0x160] sm:$0xff]
    %v61 = vld [vmem:[%s0 + $0x168] sm:$0xff]
    %v62 = vld [vmem:[%s0 + $0x170] sm:$0xff]
    %v63 = vld [vmem:[%s0 + $0x178] sm:$0xff]
    %v64 = vld [vmem:[%s0 + $0x180] sm:$0xff]
    %v65 = vld [vmem:[%s0 + $0x188] sm:$0xff]
    %v66 = vld [vmem:[%s0 + $0x190] sm:$0xff]
    %v67 = vld [vmem:[%s0 + $0x198] sm:$0xff]
    %v68 = vld [vmem:[%s0 + $0x1a0] sm:$0xff]
    %v69 = vld [vmem:[%s0 + $0x1a8] sm:$0xff]
    %v70 = vld [vmem:[%s0 + $0x1b0] sm:$0xff]
    %v71 = vld [vmem:[%s0 + $0x1b8] sm:$0xff]
    %v72 = vld [vmem:[%s0 + $0x1c0] sm:$0xff]
    %v73 = vld [vmem:[%s0 + $0x1c8] sm:$0xff]
    %v74 = vld [vmem:[%s0 + $0x1d0] sm:$0xff]
    %v75 = vld [vmem:[%s0 + $0x1d8] sm:$0xff]
    %v76 = vld [vmem:[%s0 + $0x1e0] sm:$0xff]
    %v77 = vld [vmem:[%s0 + $0x1e8] sm:$0xff]
    %v78 = vld [vmem:[%s0 + $0x1f0] sm:$0xff]
    %v79 = vld [vmem:[%s0 + $0x1f8] sm:$0xff]
    %v80 = vld [vmem:[%s1] sm:$0xf]
    %v81 = vld [vmem:[%s1 + $0x4] sm:$0xf]
    %v82 = vld [vmem:[%s1 + $0x8] sm:$0xf]
    %v83 = vld [vmem:[%s1 + $0xc] sm:$0xf]
    %v84 = vld [vmem:[%s1 + $0x10] sm:$0xf]
    %v85 = vld [vmem:[%s1 + $0x14] sm:$0xf]
    %v86 = vld [vmem:[%s1 + $0x18] sm:$0xf]
    %v87 = vld [vmem:[%s1 + $0x1c] sm:$0xf]
    %v88 = vld [vmem:[%s1 + $0x20] sm:$0xf]
    %v89 = vld [vmem:[%s1 + $0x24] sm:$0xf]
    %v90 = vld [vmem:[%s1 + $0x28] sm:$0xf]
    %v91 = vld [vmem:[%s1 + $0x2c] sm:$0xf]
    %v92 = vld [vmem:[%s1 + $0x30] sm:$0xf]
    %v93 = vld [vmem:[%s1 + $0x34] sm:$0xf]
    %v94 = vld [vmem:[%s1 + $0x38] sm:$0xf]
    %v95 = vld [vmem:[%s1 + $0x3c] sm:$0xf]
    %v96 = vld [vmem:[%s1 + $0x40] sm:$0xf]
    %v97 = vld [vmem:[%s1 + $0x44] sm:$0xf]
    %v98 = vld [vmem:[%s1 + $0x48] sm:$0x3]
    %v163 = vunpack.c.l.b16 %v16
    %v164 = vunpack.c.h.b16 %v16
    %v165 = vunpack.c.l.b16 %v17
    %v166 = vunpack.c.h.b16 %v17
    %v167 = vunpack.c.l.b16 %v18
    %v168 = vunpack.c.h.b16 %v18
    %v169 = vunpack.c.l.b16 %v19
    %v170 = vunpack.c.h.b16 %v19
    %v171 = vunpack.c.l.b16 %v20
    %v172 = vunpack.c.h.b16 %v20
    %v173 = vunpack.c.l.b16 %v21
    %v174 = vunpack.c.h.b16 %v21
    %v175 = vunpack.c.l.b16 %v22
    %v176 = vunpack.c.h.b16 %v22
    %v177 = vunpack.c.l.b16 %v23
    %v178 = vunpack.c.h.b16 %v23
    %v179 = vunpack.c.l.b16 %v24
    %v180 = vunpack.c.h.b16 %v24
    %v181 = vunpack.c.l.b16 %v25
    %v182 = vunpack.c.h.b16 %v25
    %v183 = vunpack.c.l.b16 %v26
    %v184 = vunpack.c.h.b16 %v26
    %v185 = vunpack.c.l.b16 %v27
    %v186 = vunpack.c.h.b16 %v27
    %v187 = vunpack.c.l.b16 %v28
    %v188 = vunpack.c.h.b16 %v28
    %v189 = vunpack.c.l.b16 %v29
    %v190 = vunpack.c.h.b16 %v29
    %v191 = vunpack.c.l.b16 %v30
    %v192 = vunpack.c.h.b16 %v30
    %v193 = vunpack.c.l.b16 %v31
    %v194 = vunpack.c.h.b16 %v31
    %v195 = vunpack.c.l.b16 %v32
    %v196 = vunpack.c.h.b16 %v32
    %v197 = vunpack.c.l.b16 %v33
    %v198 = vunpack.c.h.b16 %v33
    %v199 = vunpack.c.l.b16 %v34
    %v200 = vunpack.c.h.b16 %v34
    %v201 = vunpack.c.l.b16 %v35
    %v202 = vunpack.c.h.b16 %v35
    %v203 = vunpack.c.l.b16 %v36
    %v204 = vunpack.c.h.b16 %v36
    %v205 = vunpack.c.l.b16 %v37
    %v206 = vunpack.c.h.b16 %v37
    %v207 = vunpack.c.l.b16 %v38
    %v208 = vunpack.c.h.b16 %v38
    %v209 = vunpack.c.l.b16 %v39
    %v210 = vunpack.c.h.b16 %v39
    %v211 = vunpack.c.l.b16 %v40
    %v212 = vunpack.c.h.b16 %v40
    %v213 = vunpack.c.l.b16 %v41
    %v214 = vunpack.c.h.b16 %v41
    %v215 = vunpack.c.l.b16 %v42
    %v216 = vunpack.c.h.b16 %v42
    %v217 = vunpack.c.l.b16 %v43
    %v218 = vunpack.c.h.b16 %v43
    %v219 = vunpack.c.l.b16 %v44
    %v220 = vunpack.c.h.b16 %v44
    %v221 = vunpack.c.l.b16 %v45
    %v222 = vunpack.c.h.b16 %v45
    %v223 = vunpack.c.l.b16 %v46
    %v224 = vunpack.c.h.b16 %v46
    %v225 = vunpack.c.l.b16 %v47
    %v226 = vunpack.c.h.b16 %v47
    %v227 = vunpack.c.l.b16 %v48
    %v228 = vunpack.c.h.b16 %v48
    %v229 = vunpack.c.l.b16 %v49
    %v230 = vunpack.c.h.b16 %v49
    %v231 = vunpack.c.l.b16 %v50
    %v232 = vunpack.c.h.b16 %v50
    %v233 = vunpack.c.l.b16 %v51
    %v234 = vunpack.c.h.b16 %v51
    %v235 = vunpack.c.l.b16 %v52
    %v236 = vunpack.c.h.b16 %v52
    %v237 = vunpack.c.l.b16 %v53
    %v238 = vunpack.c.h.b16 %v53
    %v239 = vunpack.c.l.b16 %v54
    %v240 = vunpack.c.h.b16 %v54
    %v241 = vunpack.c.l.b16 %v55
    %v242 = vunpack.c.h.b16 %v55
    %v243 = vunpack.c.l.b16 %v56
    %v244 = vunpack.c.h.b16 %v56
    %v245 = vunpack.c.l.b16 %v57
    %v246 = vunpack.c.h.b16 %v57
    %v247 = vunpack.c.l.b16 %v58
    %v248 = vunpack.c.h.b16 %v58
    %v249 = vunpack.c.l.b16 %v59
    %v250 = vunpack.c.h.b16 %v59
    %v251 = vunpack.c.l.b16 %v60
    %v252 = vunpack.c.h.b16 %v60
    %v253 = vunpack.c.l.b16 %v61
    %v254 = vunpack.c.h.b16 %v61
    %v255 = vunpack.c.l.b16 %v62
    %v256 = vunpack.c.h.b16 %v62
    %v257 = vunpack.c.l.b16 %v63
    %v258 = vunpack.c.h.b16 %v63
    %v259 = vunpack.c.l.b16 %v64
    %v260 = vunpack.c.h.b16 %v64
    %v261 = vunpack.c.l.b16 %v65
    %v262 = vunpack.c.h.b16 %v65
    %v263 = vunpack.c.l.b16 %v66
    %v264 = vunpack.c.h.b16 %v66
    %v265 = vunpack.c.l.b16 %v67
    %v266 = vunpack.c.h.b16 %v67
    %v267 = vunpack.c.l.b16 %v68
    %v268 = vunpack.c.h.b16 %v68
    %v269 = vunpack.c.l.b16 %v69
    %v270 = vunpack.c.h.b16 %v69
    %v271 = vunpack.c.l.b16 %v70
    %v272 = vunpack.c.h.b16 %v70
    %v273 = vunpack.c.l.b16 %v71
    %v274 = vunpack.c.h.b16 %v71
    %v275 = vunpack.c.l.b16 %v72
    %v276 = vunpack.c.h.b16 %v72
    %v277 = vunpack.c.l.b16 %v73
    %v278 = vunpack.c.h.b16 %v73
    %v279 = vunpack.c.l.b16 %v74
    %v280 = vunpack.c.h.b16 %v74
    %v281 = vunpack.c.l.b16 %v75
    %v282 = vunpack.c.h.b16 %v75
    %v283 = vunpack.c.l.b16 %v76
    %v284 = vunpack.c.h.b16 %v76
    %v285 = vunpack.c.l.b16 %v77
    %v286 = vunpack.c.h.b16 %v77
    %v287 = vunpack.c.l.b16 %v78
    %v288 = vunpack.c.h.b16 %v78
    %v289 = vunpack.c.l.b16 %v79
    %v290 = vunpack.c.h.b16 %v79
    %v291 = vpack.c.b16 %v165, %v163
    %v292 = vpack.c.b16 %v166, %v164
    %v293 = vpack.c.b16 %v169, %v167
    %v294 = vpack.c.b16 %v170, %v168
    %v295 = vpack.c.b16 %v173, %v171
    %v296 = vpack.c.b16 %v174, %v172
    %v297 = vpack.c.b16 %v177, %v175
    %v298 = vpack.c.b16 %v178, %v176
    %v299 = vpack.c.b16 %v181, %v179
    %v300 = vpack.c.b16 %v182, %v180
    %v301 = vpack.c.b16 %v185, %v183
    %v302 = vpack.c.b16 %v186, %v184
    %v303 = vpack.c.b16 %v189, %v187
    %v304 = vpack.c.b16 %v190, %v188
    %v305 = vpack.c.b16 %v193, %v191
    %v306 = vpack.c.b16 %v194, %v192
    %v307 = vpack.c.b16 %v197, %v195
    %v308 = vpack.c.b16 %v198, %v196
    %v309 = vpack.c.b16 %v201, %v199
    %v310 = vpack.c.b16 %v202, %v200
    %v311 = vpack.c.b16 %v205, %v203
    %v312 = vpack.c.b16 %v206, %v204
    %v313 = vpack.c.b16 %v209, %v207
    %v314 = vpack.c.b16 %v210, %v208
    %v315 = vpack.c.b16 %v213, %v211
    %v316 = vpack.c.b16 %v214, %v212
    %v317 = vpack.c.b16 %v217, %v215
    %v318 = vpack.c.b16 %v218, %v216
    %v319 = vpack.c.b16 %v221, %v219
    %v320 = vpack.c.b16 %v222, %v220
    %v321 = vpack.c.b16 %v225, %v223
    %v322 = vpack.c.b16 %v226, %v224
    %v323 = vpack.c.b16 %v229, %v227
    %v324 = vpack.c.b16 %v230, %v228
    %v325 = vpack.c.b16 %v233, %v231
    %v326 = vpack.c.b16 %v234, %v232
    %v327 = vpack.c.b16 %v237, %v235
    %v328 = vpack.c.b16 %v238, %v236
    %v329 = vpack.c.b16 %v241, %v239
    %v330 = vpack.c.b16 %v242, %v240
    %v331 = vpack.c.b16 %v245, %v243
    %v332 = vpack.c.b16 %v246, %v244
    %v333 = vpack.c.b16 %v249, %v247
    %v334 = vpack.c.b16 %v250, %v248
    %v335 = vpack.c.b16 %v253, %v251
    %v336 = vpack.c.b16 %v254, %v252
    %v337 = vpack.c.b16 %v257, %v255
    %v338 = vpack.c.b16 %v258, %v256
    %v339 = vpack.c.b16 %v261, %v259
    %v340 = vpack.c.b16 %v262, %v260
    %v341 = vpack.c.b16 %v265, %v263
    %v342 = vpack.c.b16 %v266, %v264
    %v343 = vpack.c.b16 %v269, %v267
    %v344 = vpack.c.b16 %v270, %v268
    %v345 = vpack.c.b16 %v273, %v271
    %v346 = vpack.c.b16 %v274, %v272
    %v347 = vpack.c.b16 %v277, %v275
    %v348 = vpack.c.b16 %v278, %v276
    %v349 = vpack.c.b16 %v281, %v279
    %v350 = vpack.c.b16 %v282, %v280
    %v351 = vpack.c.b16 %v285, %v283
    %v352 = vpack.c.b16 %v286, %v284
    %v353 = vpack.c.b16 %v289, %v287
    %v354 = vpack.c.b16 %v290, %v288
    %v406 = vunpack.c.l.b16 %v80
    %v407 = vunpack.c.l.b16 %v81
    %v408 = vunpack.c.l.b16 %v82
    %v409 = vunpack.c.l.b16 %v83
    %v410 = vunpack.c.l.b16 %v84
    %v411 = vunpack.c.l.b16 %v85
    %v412 = vunpack.c.l.b16 %v86
    %v413 = vunpack.c.l.b16 %v87
    %v414 = vunpack.c.l.b16 %v88
    %v415 = vunpack.c.l.b16 %v89
    %v416 = vunpack.c.l.b16 %v90
    %v417 = vunpack.c.l.b16 %v91
    %v418 = vunpack.c.l.b16 %v92
    %v419 = vunpack.c.l.b16 %v93
    %v420 = vunpack.c.l.b16 %v94
    %v421 = vunpack.c.l.b16 %v95
    %v422 = vunpack.c.l.b16 %v96
    %v423 = vunpack.c.l.b16 %v97
    %v424 = vunpack.c.l.b16 %v98
    %v425 = vpack.c.b16 %v407, %v406
    %v426 = vpack.c.b16 %v409, %v408
    %v427 = vpack.c.b16 %v411, %v410
    %v428 = vpack.c.b16 %v413, %v412
    %v429 = vpack.c.b16 %v415, %v414
    %v430 = vpack.c.b16 %v417, %v416
    %v431 = vpack.c.b16 %v419, %v418
    %v432 = vpack.c.b16 %v421, %v420
    %v433 = vpack.c.b16 %v423, %v422
    %v434 = vpack.c.b16 %v424, %v424
    %vm444 = vcmask 154624
    %v446 = vsel %vm444, %v292, 0
    %v449 = vsel %vm444, %v294, 0
    %v452 = vsel %vm444, %v296, 0
    %v455 = vsel %vm444, %v298, 0
    %v458 = vsel %vm444, %v300, 0
    %v461 = vsel %vm444, %v302, 0
    %v464 = vsel %vm444, %v304, 0
    %v467 = vsel %vm444, %v306, 0
    %v470 = vsel %vm444, %v308, 0
    %v473 = vsel %vm444, %v310, 0
    %v476 = vsel %vm444, %v312, 0
    %v479 = vsel %vm444, %v314, 0
    %v482 = vsel %vm444, %v316, 0
    %v485 = vsel %vm444, %v318, 0
    %v488 = vsel %vm444, %v320, 0
    %v491 = vsel %vm444, %v322, 0
    %v494 = vsel %vm444, %v324, 0
    %v497 = vsel %vm444, %v326, 0
    %v500 = vsel %vm444, %v328, 0
    %v503 = vsel %vm444, %v330, 0
    %v506 = vsel %vm444, %v332, 0
    %v509 = vsel %vm444, %v334, 0
    %v512 = vsel %vm444, %v336, 0
    %v515 = vsel %vm444, %v338, 0
    %v518 = vsel %vm444, %v340, 0
    %v521 = vsel %vm444, %v342, 0
    %v524 = vsel %vm444, %v344, 0
    %v527 = vsel %vm444, %v346, 0
    %v530 = vsel %vm444, %v348, 0
    %v533 = vsel %vm444, %v350, 0
    %v536 = vsel %vm444, %v352, 0
    %v539 = vsel %vm444, %v354, 0
    %vm541 = vcmask 1040384
    %vm542 = vcmask 1041408
    %v543 = vsel %vm541, 4294967295, 65535
    %v544 = vsel %vm542, %v543, 0
    %v546 = vand.u32 %v434, %v544
    %548 = vmatprep.subr.bf16.mxu0 0
    %549 = vmatpush1.bf16.msra.mxu0 %v425
    %550 = vmatprep.subr.bf16.mxu0 0
    %551 = vmatpush1.bf16.msra.mxu0 %v426
    %552 = vmatprep.subr.bf16.mxu0 0
    %553 = vmatpush1.bf16.msra.mxu0 %v427
    %554 = vmatprep.subr.bf16.mxu0 0
    %555 = vmatpush1.bf16.msra.mxu0 %v428
    %556 = vmatprep.subr.bf16.mxu0 0
    %557 = vmatpush1.bf16.msra.mxu0 %v429
    %558 = vmatprep.subr.bf16.mxu0 0
    %559 = vmatpush1.bf16.msra.mxu0 %v430
    %560 = vmatprep.subr.bf16.mxu0 0
    %561 = vmatpush1.bf16.msra.mxu0 %v431
    %562 = vmatprep.subr.bf16.mxu0 0
    %563 = vmatpush1.bf16.msra.mxu0 %v432
    %564 = vmatprep.subr.bf16.mxu0 0
    %565 = vmatpush1.bf16.msra.mxu0 %v433
    %566 = vmatprep.subr.bf16.mxu0 0
    %567 = vmatpush1.bf16.msra.mxu0 %v546
    %568 = vmatprep.subr.bf16.mxu0 0
    %569 = vmatpush1.bf16.msra.mxu0 0
    %570 = vmatprep.subr.bf16.mxu0 0
    %571 = vmatpush1.bf16.msra.mxu0 0
    %572 = vmatprep.subr.bf16.mxu0 0
    %573 = vmatpush1.bf16.msra.mxu0 0
    %574 = vmatprep.subr.bf16.mxu0 0
    %575 = vmatpush1.bf16.msra.mxu0 0
    %576 = vmatprep.subr.bf16.mxu0 0
    %577 = vmatpush1.bf16.msra.mxu0 0
    %578 = vmatprep.subr.bf16.mxu0 0
    %579 = vmatpush1.bf16.msra.mxu0 0
    %580 = vmatprep.mubr.bf16.mxu0 %v446
    %581 = vmatmul.mubr.bf16.gmra.mrb[0].mxu0 %v291
    %v582 = vpop.f32.mrb[0].mxu0
    %v583 = vadd.f32 0.0, %v582
    %v584 = vpop.f32.mrb[0].mxu0
    %v585 = vpop.f32.mrb[0].mxu0
    %v586 = vadd.f32 0.0, %v585
    %v587 = vpop.f32.mrb[0].mxu0
    %588 = vmatprep.mubr.bf16.mxu0 %v449
    %589 = vmatmul.mubr.bf16.gmra.mrb[0].mxu0 %v293
    %v590 = vpop.f32.mrb[0].mxu0
    %v591 = vadd.f32 0.0, %v590
    %v592 = vpop.f32.mrb[0].mxu0
    %v593 = vpop.f32.mrb[0].mxu0
    %v594 = vadd.f32 0.0, %v593
    %v595 = vpop.f32.mrb[0].mxu0
    %596 = vmatprep.mubr.bf16.mxu0 %v452
    %597 = vmatmul.mubr.bf16.gmra.mrb[0].mxu0 %v295
    %v598 = vpop.f32.mrb[0].mxu0
    %v599 = vadd.f32 0.0, %v598
    %v600 = vpop.f32.mrb[0].mxu0
    %v601 = vpop.f32.mrb[0].mxu0
    %v602 = vadd.f32 0.0, %v601
    %v603 = vpop.f32.mrb[0].mxu0
    %604 = vmatprep.mubr.bf16.mxu0 %v455
    %605 = vmatmul.mubr.bf16.gmra.mrb[0].mxu0 %v297
    %v606 = vpop.f32.mrb[0].mxu0
    %v607 = vadd.f32 0.0, %v606
    %v608 = vpop.f32.mrb[0].mxu0
    %v609 = vpop.f32.mrb[0].mxu0
    %v610 = vadd.f32 0.0, %v609
    %v611 = vpop.f32.mrb[0].mxu0
    %612 = vmatprep.mubr.bf16.mxu0 %v458
    %613 = vmatmul.mubr.bf16.gmra.mrb[0].mxu0 %v299
    %v614 = vpop.f32.mrb[0].mxu0
    %v615 = vadd.f32 0.0, %v614
    %v616 = vpop.f32.mrb[0].mxu0
    %v617 = vpop.f32.mrb[0].mxu0
    %v618 = vadd.f32 0.0, %v617
    %v619 = vpop.f32.mrb[0].mxu0
    %620 = vmatprep.mubr.bf16.mxu0 %v461
    %621 = vmatmul.mubr.bf16.gmra.mrb[0].mxu0 %v301
    %v622 = vpop.f32.mrb[0].mxu0
    %v623 = vadd.f32 0.0, %v622
    %v624 = vpop.f32.mrb[0].mxu0
    %v625 = vpop.f32.mrb[0].mxu0
    %v626 = vadd.f32 0.0, %v625
    %v627 = vpop.f32.mrb[0].mxu0
    %628 = vmatprep.mubr.bf16.mxu0 %v464
    %629 = vmatmul.mubr.bf16.gmra.mrb[0].mxu0 %v303
    %v630 = vpop.f32.mrb[0].mxu0
    %v631 = vadd.f32 0.0, %v630
    %v632 = vpop.f32.mrb[0].mxu0
    %v633 = vpop.f32.mrb[0].mxu0
    %v634 = vadd.f32 0.0, %v633
    %v635 = vpop.f32.mrb[0].mxu0
    %636 = vmatprep.mubr.bf16.mxu0 %v467
    %637 = vmatmul.mubr.bf16.gmra.mrb[0].mxu0 %v305
    %v638 = vpop.f32.mrb[0].mxu0
    %v639 = vadd.f32 0.0, %v638
    %v640 = vpop.f32.mrb[0].mxu0
    %v641 = vpop.f32.mrb[0].mxu0
    %v642 = vadd.f32 0.0, %v641
    %v643 = vpop.f32.mrb[0].mxu0
    %644 = vmatprep.mubr.bf16.mxu0 %v470
    %645 = vmatmul.mubr.bf16.gmra.mrb[0].mxu0 %v307
    %v646 = vpop.f32.mrb[0].mxu0
    %v647 = vadd.f32 0.0, %v646
    %v648 = vpop.f32.mrb[0].mxu0
    %v649 = vpop.f32.mrb[0].mxu0
    %v650 = vadd.f32 0.0, %v649
    %v651 = vpop.f32.mrb[0].mxu0
    %652 = vmatprep.mubr.bf16.mxu0 %v473
    %653 = vmatmul.mubr.bf16.gmra.mrb[0].mxu0 %v309
    %v654 = vpop.f32.mrb[0].mxu0
    %v655 = vadd.f32 0.0, %v654
    %v656 = vpop.f32.mrb[0].mxu0
    %v657 = vpop.f32.mrb[0].mxu0
    %v658 = vadd.f32 0.0, %v657
    %v659 = vpop.f32.mrb[0].mxu0
    %660 = vmatprep.mubr.bf16.mxu0 %v476
    %661 = vmatmul.mubr.bf16.gmra.mrb[0].mxu0 %v311
    %v662 = vpop.f32.mrb[0].mxu0
    %v663 = vadd.f32 0.0, %v662
    %v664 = vpop.f32.mrb[0].mxu0
    %v665 = vpop.f32.mrb[0].mxu0
    %v666 = vadd.f32 0.0, %v665
    %v667 = vpop.f32.mrb[0].mxu0
    %668 = vmatprep.mubr.bf16.mxu0 %v479
    %669 = vmatmul.mubr.bf16.gmra.mrb[0].mxu0 %v313
    %v670 = vpop.f32.mrb[0].mxu0
    %v671 = vadd.f32 0.0, %v670
    %v672 = vpop.f32.mrb[0].mxu0
    %v673 = vpop.f32.mrb[0].mxu0
    %v674 = vadd.f32 0.0, %v673
    %v675 = vpop.f32.mrb[0].mxu0
    %676 = vmatprep.mubr.bf16.mxu0 %v482
    %677 = vmatmul.mubr.bf16.gmra.mrb[0].mxu0 %v315
    %v678 = vpop.f32.mrb[0].mxu0
    %v679 = vadd.f32 0.0, %v678
    %v680 = vpop.f32.mrb[0].mxu0
    %v681 = vpop.f32.mrb[0].mxu0
    %v682 = vadd.f32 0.0, %v681
    %v683 = vpop.f32.mrb[0].mxu0
    %684 = vmatprep.mubr.bf16.mxu0 %v485
    %685 = vmatmul.mubr.bf16.gmra.mrb[0].mxu0 %v317
    %v686 = vpop.f32.mrb[0].mxu0
    %v687 = vadd.f32 0.0, %v686
    %v688 = vpop.f32.mrb[0].mxu0
    %v689 = vpop.f32.mrb[0].mxu0
    %v690 = vadd.f32 0.0, %v689
    %v691 = vpop.f32.mrb[0].mxu0
    %692 = vmatprep.mubr.bf16.mxu0 %v488
    %693 = vmatmul.mubr.bf16.gmra.mrb[0].mxu0 %v319
    %v694 = vpop.f32.mrb[0].mxu0
    %v695 = vadd.f32 0.0, %v694
    %v696 = vpop.f32.mrb[0].mxu0
    %v697 = vpop.f32.mrb[0].mxu0
    %v698 = vadd.f32 0.0, %v697
    %v699 = vpop.f32.mrb[0].mxu0
    %700 = vmatprep.mubr.bf16.mxu0 %v491
    %701 = vmatmul.mubr.bf16.gmra.mrb[0].mxu0 %v321
    %v702 = vpop.f32.mrb[0].mxu0
    %v703 = vadd.f32 0.0, %v702
    %v704 = vpop.f32.mrb[0].mxu0
    %v705 = vpop.f32.mrb[0].mxu0
    %v706 = vadd.f32 0.0, %v705
    %v707 = vpop.f32.mrb[0].mxu0
    %708 = vmatprep.mubr.bf16.mxu0 %v494
    %709 = vmatmul.mubr.bf16.gmra.mrb[0].mxu0 %v323
    %v710 = vpop.f32.mrb[0].mxu0
    %v711 = vadd.f32 0.0, %v710
    %v712 = vpop.f32.mrb[0].mxu0
    %v713 = vpop.f32.mrb[0].mxu0
    %v714 = vadd.f32 0.0, %v713
    %v715 = vpop.f32.mrb[0].mxu0
    %716 = vmatprep.mubr.bf16.mxu0 %v497
    %717 = vmatmul.mubr.bf16.gmra.mrb[0].mxu0 %v325
    %v718 = vpop.f32.mrb[0].mxu0
    %v719 = vadd.f32 0.0, %v718
    %v720 = vpop.f32.mrb[0].mxu0
    %v721 = vpop.f32.mrb[0].mxu0
    %v722 = vadd.f32 0.0, %v721
    %v723 = vpop.f32.mrb[0].mxu0
    %724 = vmatprep.mubr.bf16.mxu0 %v500
    %725 = vmatmul.mubr.bf16.gmra.mrb[0].mxu0 %v327
    %v726 = vpop.f32.mrb[0].mxu0
    %v727 = vadd.f32 0.0, %v726
    %v728 = vpop.f32.mrb[0].mxu0
    %v729 = vpop.f32.mrb[0].mxu0
    %v730 = vadd.f32 0.0, %v729
    %v731 = vpop.f32.mrb[0].mxu0
    %732 = vmatprep.mubr.bf16.mxu0 %v503
    %733 = vmatmul.mubr.bf16.gmra.mrb[0].mxu0 %v329
    %v734 = vpop.f32.mrb[0].mxu0
    %v735 = vadd.f32 0.0, %v734
    %v736 = vpop.f32.mrb[0].mxu0
    %v737 = vpop.f32.mrb[0].mxu0
    %v738 = vadd.f32 0.0, %v737
    %v739 = vpop.f32.mrb[0].mxu0
    %740 = vmatprep.mubr.bf16.mxu0 %v506
    %741 = vmatmul.mubr.bf16.gmra.mrb[0].mxu0 %v331
    %v742 = vpop.f32.mrb[0].mxu0
    %v743 = vadd.f32 0.0, %v742
    %v744 = vpop.f32.mrb[0].mxu0
    %v745 = vpop.f32.mrb[0].mxu0
    %v746 = vadd.f32 0.0, %v745
    %v747 = vpop.f32.mrb[0].mxu0
    %748 = vmatprep.mubr.bf16.mxu0 %v509
    %749 = vmatmul.mubr.bf16.gmra.mrb[0].mxu0 %v333
    %v750 = vpop.f32.mrb[0].mxu0
    %v751 = vadd.f32 0.0, %v750
    %v752 = vpop.f32.mrb[0].mxu0
    %v753 = vpop.f32.mrb[0].mxu0
    %v754 = vadd.f32 0.0, %v753
    %v755 = vpop.f32.mrb[0].mxu0
    %756 = vmatprep.mubr.bf16.mxu0 %v512
    %757 = vmatmul.mubr.bf16.gmra.mrb[0].mxu0 %v335
    %v758 = vpop.f32.mrb[0].mxu0
    %v759 = vadd.f32 0.0, %v758
    %v760 = vpop.f32.mrb[0].mxu0
    %v761 = vpop.f32.mrb[0].mxu0
    %v762 = vadd.f32 0.0, %v761
    %v763 = vpop.f32.mrb[0].mxu0
    %764 = vmatprep.mubr.bf16.mxu0 %v515
    %765 = vmatmul.mubr.bf16.gmra.mrb[0].mxu0 %v337
    %v766 = vpop.f32.mrb[0].mxu0
    %v767 = vadd.f32 0.0, %v766
    %v768 = vpop.f32.mrb[0].mxu0
    %v769 = vpop.f32.mrb[0].mxu0
    %v770 = vadd.f32 0.0, %v769
    %v771 = vpop.f32.mrb[0].mxu0
    %772 = vmatprep.mubr.bf16.mxu0 %v518
    %773 = vmatmul.mubr.bf16.gmra.mrb[0].mxu0 %v339
    %v774 = vpop.f32.mrb[0].mxu0
    %v775 = vadd.f32 0.0, %v774
    %v776 = vpop.f32.mrb[0].mxu0
    %v777 = vpop.f32.mrb[0].mxu0
    %v778 = vadd.f32 0.0, %v777
    %v779 = vpop.f32.mrb[0].mxu0
    %780 = vmatprep.mubr.bf16.mxu0 %v521
    %781 = vmatmul.mubr.bf16.gmra.mrb[0].mxu0 %v341
    %v782 = vpop.f32.mrb[0].mxu0
    %v783 = vadd.f32 0.0, %v782
    %v784 = vpop.f32.mrb[0].mxu0
    %v785 = vpop.f32.mrb[0].mxu0
    %v786 = vadd.f32 0.0, %v785
    %v787 = vpop.f32.mrb[0].mxu0
    %788 = vmatprep.mubr.bf16.mxu0 %v524
    %789 = vmatmul.mubr.bf16.gmra.mrb[0].mxu0 %v343
    %v790 = vpop.f32.mrb[0].mxu0
    %v791 = vadd.f32 0.0, %v790
    %v792 = vpop.f32.mrb[0].mxu0
    %v793 = vpop.f32.mrb[0].mxu0
    %v794 = vadd.f32 0.0, %v793
    %v795 = vpop.f32.mrb[0].mxu0
    %796 = vmatprep.mubr.bf16.mxu0 %v527
    %797 = vmatmul.mubr.bf16.gmra.mrb[0].mxu0 %v345
    %v798 = vpop.f32.mrb[0].mxu0
    %v799 = vadd.f32 0.0, %v798
    %v800 = vpop.f32.mrb[0].mxu0
    %v801 = vpop.f32.mrb[0].mxu0
    %v802 = vadd.f32 0.0, %v801
    %v803 = vpop.f32.mrb[0].mxu0
    %804 = vmatprep.mubr.bf16.mxu0 %v530
    %805 = vmatmul.mubr.bf16.gmra.mrb[0].mxu0 %v347
    %v806 = vpop.f32.mrb[0].mxu0
    %v807 = vadd.f32 0.0, %v806
    %v808 = vpop.f32.mrb[0].mxu0
    %v809 = vpop.f32.mrb[0].mxu0
    %v810 = vadd.f32 0.0, %v809
    %v811 = vpop.f32.mrb[0].mxu0
    %812 = vmatprep.mubr.bf16.mxu0 %v533
    %813 = vmatmul.mubr.bf16.gmra.mrb[0].mxu0 %v349
    %v814 = vpop.f32.mrb[0].mxu0
    %v815 = vadd.f32 0.0, %v814
    %v816 = vpop.f32.mrb[0].mxu0
    %v817 = vpop.f32.mrb[0].mxu0
    %v818 = vadd.f32 0.0, %v817
    %v819 = vpop.f32.mrb[0].mxu0
    %820 = vmatprep.mubr.bf16.mxu0 %v536
    %821 = vmatmul.mubr.bf16.gmra.mrb[0].mxu0 %v351
    %v822 = vpop.f32.mrb[0].mxu0
    %v823 = vadd.f32 0.0, %v822
    %v824 = vpop.f32.mrb[0].mxu0
    %v825 = vpop.f32.mrb[0].mxu0
    %v826 = vadd.f32 0.0, %v825
    %v827 = vpop.f32.mrb[0].mxu0
    %828 = vmatprep.mubr.bf16.mxu0 %v539
    %829 = vmatmul.mubr.bf16.gmra.mrb[0].mxu0 %v353
    %v830 = vpop.f32.mrb[0].mxu0
    %v831 = vadd.f32 0.0, %v830
    %v832 = vpop.f32.mrb[0].mxu0
    %v833 = vpop.f32.mrb[0].mxu0
    %v834 = vadd.f32 0.0, %v833
    %v835 = vpop.f32.mrb[0].mxu0
    %836 = vdwg.mxu0
    %v837 = vpack.c.bf16 %v586, %v583
    %v838 = vpack.c.bf16 %v594, %v591
    %v839 = vpack.c.bf16 %v602, %v599
    %v840 = vpack.c.bf16 %v610, %v607
    %v841 = vpack.c.bf16 %v618, %v615
    %v842 = vpack.c.bf16 %v626, %v623
    %v843 = vpack.c.bf16 %v634, %v631
    %v844 = vpack.c.bf16 %v642, %v639
    %v845 = vpack.c.bf16 %v650, %v647
    %v846 = vpack.c.bf16 %v658, %v655
    %v847 = vpack.c.bf16 %v666, %v663
    %v848 = vpack.c.bf16 %v674, %v671
    %v849 = vpack.c.bf16 %v682, %v679
    %v850 = vpack.c.bf16 %v690, %v687
    %v851 = vpack.c.bf16 %v698, %v695
    %v852 = vpack.c.bf16 %v706, %v703
    %v853 = vpack.c.bf16 %v714, %v711
    %v854 = vpack.c.bf16 %v722, %v719
    %v855 = vpack.c.bf16 %v730, %v727
    %v856 = vpack.c.bf16 %v738, %v735
    %v857 = vpack.c.bf16 %v746, %v743
    %v858 = vpack.c.bf16 %v754, %v751
    %v859 = vpack.c.bf16 %v762, %v759
    %v860 = vpack.c.bf16 %v770, %v767
    %v861 = vpack.c.bf16 %v778, %v775
    %v862 = vpack.c.bf16 %v786, %v783
    %v863 = vpack.c.bf16 %v794, %v791
    %v864 = vpack.c.bf16 %v802, %v799
    %v865 = vpack.c.bf16 %v810, %v807
    %v866 = vpack.c.bf16 %v818, %v815
    %v867 = vpack.c.bf16 %v826, %v823
    %v868 = vpack.c.bf16 %v834, %v831
    %v901 = vunpack.c.l.b16 %v837
    %v902 = vunpack.c.h.b16 %v837
    %v903 = vunpack.c.l.b16 %v838
    %v904 = vunpack.c.h.b16 %v838
    %v905 = vunpack.c.l.b16 %v839
    %v906 = vunpack.c.h.b16 %v839
    %v907 = vunpack.c.l.b16 %v840
    %v908 = vunpack.c.h.b16 %v840
    %v909 = vunpack.c.l.b16 %v841
    %v910 = vunpack.c.h.b16 %v841
    %v911 = vunpack.c.l.b16 %v842
    %v912 = vunpack.c.h.b16 %v842
    %v913 = vunpack.c.l.b16 %v843
    %v914 = vunpack.c.h.b16 %v843
    %v915 = vunpack.c.l.b16 %v844
    %v916 = vunpack.c.h.b16 %v844
    %v917 = vunpack.c.l.b16 %v845
    %v918 = vunpack.c.h.b16 %v845
    %v919 = vunpack.c.l.b16 %v846
    %v920 = vunpack.c.h.b16 %v846
    %v921 = vunpack.c.l.b16 %v847
    %v922 = vunpack.c.h.b16 %v847
    %v923 = vunpack.c.l.b16 %v848
    %v924 = vunpack.c.h.b16 %v848
    %v925 = vunpack.c.l.b16 %v849
    %v926 = vunpack.c.h.b16 %v849
    %v927 = vunpack.c.l.b16 %v850
    %v928 = vunpack.c.h.b16 %v850
    %v929 = vunpack.c.l.b16 %v851
    %v930 = vunpack.c.h.b16 %v851
    %v931 = vunpack.c.l.b16 %v852
    %v932 = vunpack.c.h.b16 %v852
    %v933 = vunpack.c.l.b16 %v853
    %v934 = vunpack.c.h.b16 %v853
    %v935 = vunpack.c.l.b16 %v854
    %v936 = vunpack.c.h.b16 %v854
    %v937 = vunpack.c.l.b16 %v855
    %v938 = vunpack.c.h.b16 %v855
    %v939 = vunpack.c.l.b16 %v856
    %v940 = vunpack.c.h.b16 %v856
    %v941 = vunpack.c.l.b16 %v857
    %v942 = vunpack.c.h.b16 %v857
    %v943 = vunpack.c.l.b16 %v858
    %v944 = vunpack.c.h.b16 %v858
    %v945 = vunpack.c.l.b16 %v859
    %v946 = vunpack.c.h.b16 %v859
    %v947 = vunpack.c.l.b16 %v860
    %v948 = vunpack.c.h.b16 %v860
    %v949 = vunpack.c.l.b16 %v861
    %v950 = vunpack.c.h.b16 %v861
    %v951 = vunpack.c.l.b16 %v862
    %v952 = vunpack.c.h.b16 %v862
    %v953 = vunpack.c.l.b16 %v863
    %v954 = vunpack.c.h.b16 %v863
    %v955 = vunpack.c.l.b16 %v864
    %v956 = vunpack.c.h.b16 %v864
    %v957 = vunpack.c.l.b16 %v865
    %v958 = vunpack.c.h.b16 %v865
    %v959 = vunpack.c.l.b16 %v866
    %v960 = vunpack.c.h.b16 %v866
    %v961 = vunpack.c.l.b16 %v867
    %v962 = vunpack.c.h.b16 %v867
    %v963 = vunpack.c.l.b16 %v868
    %v964 = vunpack.c.h.b16 %v868
    %v965 = vpack.c.b16 %v901, %v901
    %v966 = vpack.c.b16 %v902, %v902
    %v967 = vpack.c.b16 %v903, %v903
    %v968 = vpack.c.b16 %v904, %v904
    %v969 = vpack.c.b16 %v905, %v905
    %v970 = vpack.c.b16 %v906, %v906
    %v971 = vpack.c.b16 %v907, %v907
    %v972 = vpack.c.b16 %v908, %v908
    %v973 = vpack.c.b16 %v909, %v909
    %v974 = vpack.c.b16 %v910, %v910
    %v975 = vpack.c.b16 %v911, %v911
    %v976 = vpack.c.b16 %v912, %v912
    %v977 = vpack.c.b16 %v913, %v913
    %v978 = vpack.c.b16 %v914, %v914
    %v979 = vpack.c.b16 %v915, %v915
    %v980 = vpack.c.b16 %v916, %v916
    %v981 = vpack.c.b16 %v917, %v917
    %v982 = vpack.c.b16 %v918, %v918
    %v983 = vpack.c.b16 %v919, %v919
    %v984 = vpack.c.b16 %v920, %v920
    %v985 = vpack.c.b16 %v921, %v921
    %v986 = vpack.c.b16 %v922, %v922
    %v987 = vpack.c.b16 %v923, %v923
    %v988 = vpack.c.b16 %v924, %v924
    %v989 = vpack.c.b16 %v925, %v925
    %v990 = vpack.c.b16 %v926, %v926
    %v991 = vpack.c.b16 %v927, %v927
    %v992 = vpack.c.b16 %v928, %v928
    %v993 = vpack.c.b16 %v929, %v929
    %v994 = vpack.c.b16 %v930, %v930
    %v995 = vpack.c.b16 %v931, %v931
    %v996 = vpack.c.b16 %v932, %v932
    %v997 = vpack.c.b16 %v933, %v933
    %v998 = vpack.c.b16 %v934, %v934
    %v999 = vpack.c.b16 %v935, %v935
    %v1000 = vpack.c.b16 %v936, %v936
    %v1001 = vpack.c.b16 %v937, %v937
    %v1002 = vpack.c.b16 %v938, %v938
    %v1003 = vpack.c.b16 %v939, %v939
    %v1004 = vpack.c.b16 %v940, %v940
    %v1005 = vpack.c.b16 %v941, %v941
    %v1006 = vpack.c.b16 %v942, %v942
    %v1007 = vpack.c.b16 %v943, %v943
    %v1008 = vpack.c.b16 %v944, %v944
    %v1009 = vpack.c.b16 %v945, %v945
    %v1010 = vpack.c.b16 %v946, %v946
    %v1011 = vpack.c.b16 %v947, %v947
    %v1012 = vpack.c.b16 %v948, %v948
    %v1013 = vpack.c.b16 %v949, %v949
    %v1014 = vpack.c.b16 %v950, %v950
    %v1015 = vpack.c.b16 %v951, %v951
    %v1016 = vpack.c.b16 %v952, %v952
    %v1017 = vpack.c.b16 %v953, %v953
    %v1018 = vpack.c.b16 %v954, %v954
    %v1019 = vpack.c.b16 %v955, %v955
    %v1020 = vpack.c.b16 %v956, %v956
    %v1021 = vpack.c.b16 %v957, %v957
    %v1022 = vpack.c.b16 %v958, %v958
    %v1023 = vpack.c.b16 %v959, %v959
    %v1024 = vpack.c.b16 %v960, %v960
    %v1025 = vpack.c.b16 %v961, %v961
    %v1026 = vpack.c.b16 %v962, %v962
    %v1027 = vpack.c.b16 %v963, %v963
    %v1028 = vpack.c.b16 %v964, %v964
    %vm1093 = vcmask 519168
    %1094 = vst.msk [vmem:[#allocation2] sm:$0xf] %vm1093, %v965
    %1095 = vst.msk [vmem:[#allocation2 + $0x4] sm:$0xf] %vm1093, %v966
    %1096 = vst.msk [vmem:[#allocation2 + $0x8] sm:$0xf] %vm1093, %v967
    %1097 = vst.msk [vmem:[#allocation2 + $0xc] sm:$0xf] %vm1093, %v968
    %1098 = vst.msk [vmem:[#allocation2 + $0x10] sm:$0xf] %vm1093, %v969
    %1099 = vst.msk [vmem:[#allocation2 + $0x14] sm:$0xf] %vm1093, %v970
    %1100 = vst.msk [vmem:[#allocation2 + $0x18] sm:$0xf] %vm1093, %v971
    %1101 = vst.msk [vmem:[#allocation2 + $0x1c] sm:$0xf] %vm1093, %v972
    %1102 = vst.msk [vmem:[#allocation2 + $0x20] sm:$0xf] %vm1093, %v973
    %1103 = vst.msk [vmem:[#allocation2 + $0x24] sm:$0xf] %vm1093, %v974
    %1104 = vst.msk [vmem:[#allocation2 + $0x28] sm:$0xf] %vm1093, %v975
    %1105 = vst.msk [vmem:[#allocation2 + $0x2c] sm:$0xf] %vm1093, %v976
    %1106 = vst.msk [vmem:[#allocation2 + $0x30] sm:$0xf] %vm1093, %v977
    %1107 = vst.msk [vmem:[#allocation2 + $0x34] sm:$0xf] %vm1093, %v978
    %1108 = vst.msk [vmem:[#allocation2 + $0x38] sm:$0xf] %vm1093, %v979
    %1109 = vst.msk [vmem:[#allocation2 + $0x3c] sm:$0xf] %vm1093, %v980
    %1110 = vst.msk [vmem:[#allocation2 + $0x40] sm:$0xf] %vm1093, %v981
    %1111 = vst.msk [vmem:[#allocation2 + $0x44] sm:$0xf] %vm1093, %v982
    %1112 = vst.msk [vmem:[#allocation2 + $0x48] sm:$0xf] %vm1093, %v983
    %1113 = vst.msk [vmem:[#allocation2 + $0x4c] sm:$0xf] %vm1093, %v984
    %1114 = vst.msk [vmem:[#allocation2 + $0x50] sm:$0xf] %vm1093, %v985
    %1115 = vst.msk [vmem:[#allocation2 + $0x54] sm:$0xf] %vm1093, %v986
    %1116 = vst.msk [vmem:[#allocation2 + $0x58] sm:$0xf] %vm1093, %v987
    %1117 = vst.msk [vmem:[#allocation2 + $0x5c] sm:$0xf] %vm1093, %v988
    %1118 = vst.msk [vmem:[#allocation2 + $0x60] sm:$0xf] %vm1093, %v989
    %1119 = vst.msk [vmem:[#allocation2 + $0x64] sm:$0xf] %vm1093, %v990
    %1120 = vst.msk [vmem:[#allocation2 + $0x68] sm:$0xf] %vm1093, %v991
    %1121 = vst.msk [vmem:[#allocation2 + $0x6c] sm:$0xf] %vm1093, %v992
    %1122 = vst.msk [vmem:[#allocation2 + $0x70] sm:$0xf] %vm1093, %v993
    %1123 = vst.msk [vmem:[#allocation2 + $0x74] sm:$0xf] %vm1093, %v994
    %1124 = vst.msk [vmem:[#allocation2 + $0x78] sm:$0xf] %vm1093, %v995
    %1125 = vst.msk [vmem:[#allocation2 + $0x7c] sm:$0xf] %vm1093, %v996
    %1126 = vst.msk [vmem:[#allocation2 + $0x80] sm:$0xf] %vm1093, %v997
    %1127 = vst.msk [vmem:[#allocation2 + $0x84] sm:$0xf] %vm1093, %v998
    %1128 = vst.msk [vmem:[#allocation2 + $0x88] sm:$0xf] %vm1093, %v999
    %1129 = vst.msk [vmem:[#allocation2 + $0x8c] sm:$0xf] %vm1093, %v1000
    %1130 = vst.msk [vmem:[#allocation2 + $0x90] sm:$0xf] %vm1093, %v1001
    %1131 = vst.msk [vmem:[#allocation2 + $0x94] sm:$0xf] %vm1093, %v1002
    %1132 = vst.msk [vmem:[#allocation2 + $0x98] sm:$0xf] %vm1093, %v1003
    %1133 = vst.msk [vmem:[#allocation2 + $0x9c] sm:$0xf] %vm1093, %v1004
    %1134 = vst.msk [vmem:[#allocation2 + $0xa0] sm:$0xf] %vm1093, %v1005
    %1135 = vst.msk [vmem:[#allocation2 + $0xa4] sm:$0xf] %vm1093, %v1006
    %1136 = vst.msk [vmem:[#allocation2 + $0xa8] sm:$0xf] %vm1093, %v1007
    %1137 = vst.msk [vmem:[#allocation2 + $0xac] sm:$0xf] %vm1093, %v1008
    %1138 = vst.msk [vmem:[#allocation2 + $0xb0] sm:$0xf] %vm1093, %v1009
    %1139 = vst.msk [vmem:[#allocation2 + $0xb4] sm:$0xf] %vm1093, %v1010
    %1140 = vst.msk [vmem:[#allocation2 + $0xb8] sm:$0xf] %vm1093, %v1011
    %1141 = vst.msk [vmem:[#allocation2 + $0xbc] sm:$0xf] %vm1093, %v1012
    %1142 = vst.msk [vmem:[#allocation2 + $0xc0] sm:$0xf] %vm1093, %v1013
    %1143 = vst.msk [vmem:[#allocation2 + $0xc4] sm:$0xf] %vm1093, %v1014
    %1144 = vst.msk [vmem:[#allocation2 + $0xc8] sm:$0xf] %vm1093, %v1015
    %1145 = vst.msk [vmem:[#allocation2 + $0xcc] sm:$0xf] %vm1093, %v1016
    %1146 = vst.msk [vmem:[#allocation2 + $0xd0] sm:$0xf] %vm1093, %v1017
    %1147 = vst.msk [vmem:[#allocation2 + $0xd4] sm:$0xf] %vm1093, %v1018
    %1148 = vst.msk [vmem:[#allocation2 + $0xd8] sm:$0xf] %vm1093, %v1019
    %1149 = vst.msk [vmem:[#allocation2 + $0xdc] sm:$0xf] %vm1093, %v1020
    %1150 = vst.msk [vmem:[#allocation2 + $0xe0] sm:$0xf] %vm1093, %v1021
    %1151 = vst.msk [vmem:[#allocation2 + $0xe4] sm:$0xf] %vm1093, %v1022
    %1152 = vst.msk [vmem:[#allocation2 + $0xe8] sm:$0xf] %vm1093, %v1023
    %1153 = vst.msk [vmem:[#allocation2 + $0xec] sm:$0xf] %vm1093, %v1024
    %1154 = vst.msk [vmem:[#allocation2 + $0xf0] sm:$0xf] %vm1093, %v1025
    %1155 = vst.msk [vmem:[#allocation2 + $0xf4] sm:$0xf] %vm1093, %v1026
    %1156 = vst.msk [vmem:[#allocation2 + $0xf8] sm:$0xf] %vm1093, %v1027
    %1157 = vst.msk [vmem:[#allocation2 + $0xfc] sm:$0xf] %vm1093, %v1028
    %vm1158 = vcmask 523264
    %v1159 = vsel %vm1158, %v583, 0.0
    %v1160 = vsel %vm1158, %v586, 0.0
    %v1161 = vadd.f32 %v1159, %v1160
    %v1162 = vsel %vm1158, %v591, 0.0
    %v1163 = vadd.f32 %v1161, %v1162
    %v1164 = vsel %vm1158, %v594, 0.0
    %v1165 = vadd.f32 %v1163, %v1164
    %v1166 = vsel %vm1158, %v599, 0.0
    %v1167 = vadd.f32 %v1165, %v1166
    %v1168 = vsel %vm1158, %v602, 0.0
    %v1169 = vadd.f32 %v1167, %v1168
    %v1170 = vsel %vm1158, %v607, 0.0
    %v1171 = vadd.f32 %v1169, %v1170
    %v1172 = vsel %vm1158, %v610, 0.0
    %v1173 = vadd.f32 %v1171, %v1172
    %v1174 = vsel %vm1158, %v615, 0.0
    %v1175 = vadd.f32 %v1173, %v1174
    %v1176 = vsel %vm1158, %v618, 0.0
    %v1177 = vadd.f32 %v1175, %v1176
    %v1178 = vsel %vm1158, %v623, 0.0
    %v1179 = vadd.f32 %v1177, %v1178
    %v1180 = vsel %vm1158, %v626, 0.0
    %v1181 = vadd.f32 %v1179, %v1180
    %v1182 = vsel %vm1158, %v631, 0.0
    %v1183 = vadd.f32 %v1181, %v1182
    %v1184 = vsel %vm1158, %v634, 0.0
    %v1185 = vadd.f32 %v1183, %v1184
    %v1186 = vsel %vm1158, %v639, 0.0
    %v1187 = vadd.f32 %v1185, %v1186
    %v1188 = vsel %vm1158, %v642, 0.0
    %v1189 = vadd.f32 %v1187, %v1188
    %v1190 = vsel %vm1158, %v647, 0.0
    %v1191 = vadd.f32 %v1189, %v1190
    %v1192 = vsel %vm1158, %v650, 0.0
    %v1193 = vadd.f32 %v1191, %v1192
    %v1194 = vsel %vm1158, %v655, 0.0
    %v1195 = vadd.f32 %v1193, %v1194
    %v1196 = vsel %vm1158, %v658, 0.0
    %v1197 = vadd.f32 %v1195, %v1196
    %v1198 = vsel %vm1158, %v663, 0.0
    %v1199 = vadd.f32 %v1197, %v1198
    %v1200 = vsel %vm1158, %v666, 0.0
    %v1201 = vadd.f32 %v1199, %v1200
    %v1202 = vsel %vm1158, %v671, 0.0
    %v1203 = vadd.f32 %v1201, %v1202
    %v1204 = vsel %vm1158, %v674, 0.0
    %v1205 = vadd.f32 %v1203, %v1204
    %v1206 = vsel %vm1158, %v679, 0.0
    %v1207 = vadd.f32 %v1205, %v1206
    %v1208 = vsel %vm1158, %v682, 0.0
    %v1209 = vadd.f32 %v1207, %v1208
    %v1210 = vsel %vm1158, %v687, 0.0
    %v1211 = vadd.f32 %v1209, %v1210
    %v1212 = vsel %vm1158, %v690, 0.0
    %v1213 = vadd.f32 %v1211, %v1212
    %v1214 = vsel %vm1158, %v695, 0.0
    %v1215 = vadd.f32 %v1213, %v1214
    %v1216 = vsel %vm1158, %v698, 0.0
    %v1217 = vadd.f32 %v1215, %v1216
    %v1218 = vsel %vm1158, %v703, 0.0
    %v1219 = vadd.f32 %v1217, %v1218
    %v1220 = vsel %vm1158, %v706, 0.0
    %v1221 = vadd.f32 %v1219, %v1220
    %v1222 = vsel %vm1158, %v711, 0.0
    %v1223 = vadd.f32 %v1221, %v1222
    %v1224 = vsel %vm1158, %v714, 0.0
    %v1225 = vadd.f32 %v1223, %v1224
    %v1226 = vsel %vm1158, %v719, 0.0
    %v1227 = vadd.f32 %v1225, %v1226
    %v1228 = vsel %vm1158, %v722, 0.0
    %v1229 = vadd.f32 %v1227, %v1228
    %v1230 = vsel %vm1158, %v727, 0.0
    %v1231 = vadd.f32 %v1229, %v1230
    %v1232 = vsel %vm1158, %v730, 0.0
    %v1233 = vadd.f32 %v1231, %v1232
    %v1234 = vsel %vm1158, %v735, 0.0
    %v1235 = vadd.f32 %v1233, %v1234
    %v1236 = vsel %vm1158, %v738, 0.0
    %v1237 = vadd.f32 %v1235, %v1236
    %v1238 = vsel %vm1158, %v743, 0.0
    %v1239 = vadd.f32 %v1237, %v1238
    %v1240 = vsel %vm1158, %v746, 0.0
    %v1241 = vadd.f32 %v1239, %v1240
    %v1242 = vsel %vm1158, %v751, 0.0
    %v1243 = vadd.f32 %v1241, %v1242
    %v1244 = vsel %vm1158, %v754, 0.0
    %v1245 = vadd.f32 %v1243, %v1244
    %v1246 = vsel %vm1158, %v759, 0.0
    %v1247 = vadd.f32 %v1245, %v1246
    %v1248 = vsel %vm1158, %v762, 0.0
    %v1249 = vadd.f32 %v1247, %v1248
    %v1250 = vsel %vm1158, %v767, 0.0
    %v1251 = vadd.f32 %v1249, %v1250
    %v1252 = vsel %vm1158, %v770, 0.0
    %v1253 = vadd.f32 %v1251, %v1252
    %v1254 = vsel %vm1158, %v775, 0.0
    %v1255 = vadd.f32 %v1253, %v1254
    %v1256 = vsel %vm1158, %v778, 0.0
    %v1257 = vadd.f32 %v1255, %v1256
    %v1258 = vsel %vm1158, %v783, 0.0
    %v1259 = vadd.f32 %v1257, %v1258
    %v1260 = vsel %vm1158, %v786, 0.0
    %v1261 = vadd.f32 %v1259, %v1260
    %v1262 = vsel %vm1158, %v791, 0.0
    %v1263 = vadd.f32 %v1261, %v1262
    %v1264 = vsel %vm1158, %v794, 0.0
    %v1265 = vadd.f32 %v1263, %v1264
    %v1266 = vsel %vm1158, %v799, 0.0
    %v1267 = vadd.f32 %v1265, %v1266
    %v1268 = vsel %vm1158, %v802, 0.0
    %v1269 = vadd.f32 %v1267, %v1268
    %v1270 = vsel %vm1158, %v807, 0.0
    %v1271 = vadd.f32 %v1269, %v1270
    %v1272 = vsel %vm1158, %v810, 0.0
    %v1273 = vadd.f32 %v1271, %v1272
    %v1274 = vsel %vm1158, %v815, 0.0
    %v1275 = vadd.f32 %v1273, %v1274
    %v1276 = vsel %vm1158, %v818, 0.0
    %v1277 = vadd.f32 %v1275, %v1276
    %v1278 = vsel %vm1158, %v823, 0.0
    %v1279 = vadd.f32 %v1277, %v1278
    %v1280 = vsel %vm1158, %v826, 0.0
    %v1281 = vadd.f32 %v1279, %v1280
    %v1282 = vsel %vm1158, %v831, 0.0
    %v1283 = vadd.f32 %v1281, %v1282
    %v1284 = vsel %vm1158, %v834, 0.0
    %v1285 = vadd.f32 %v1283, %v1284
    %v1286 = vrot.slane %v1285, 4
    %v1287 = vadd.f32 %v1285, %v1286
    %v1288 = vrot.slane %v1287, 2
    %v1289 = vadd.f32 %v1287, %v1288
    %v1290 = vrot.slane %v1289, 1
    %v1291 = vadd.f32 %v1289, %v1290
    %v1292 = vmul.f32 %v583, %v583
    %v1293 = vmul.f32 %v586, %v586
    %v1294 = vmul.f32 %v591, %v591
    %v1295 = vmul.f32 %v594, %v594
    %v1296 = vmul.f32 %v599, %v599
    %v1297 = vmul.f32 %v602, %v602
    %v1298 = vmul.f32 %v607, %v607
    %v1299 = vmul.f32 %v610, %v610
    %v1300 = vmul.f32 %v615, %v615
    %v1301 = vmul.f32 %v618, %v618
    %v1302 = vmul.f32 %v623, %v623
    %v1303 = vmul.f32 %v626, %v626
    %v1304 = vmul.f32 %v631, %v631
    %v1305 = vmul.f32 %v634, %v634
    %v1306 = vmul.f32 %v639, %v639
    %v1307 = vmul.f32 %v642, %v642
    %v1308 = vmul.f32 %v647, %v647
    %v1309 = vmul.f32 %v650, %v650
    %v1310 = vmul.f32 %v655, %v655
    %v1311 = vmul.f32 %v658, %v658
    %v1312 = vmul.f32 %v663, %v663
    %v1313 = vmul.f32 %v666, %v666
    %v1314 = vmul.f32 %v671, %v671
    %v1315 = vmul.f32 %v674, %v674
    %v1316 = vmul.f32 %v679, %v679
    %v1317 = vmul.f32 %v682, %v682
    %v1318 = vmul.f32 %v687, %v687
    %v1319 = vmul.f32 %v690, %v690
    %v1320 = vmul.f32 %v695, %v695
    %v1321 = vmul.f32 %v698, %v698
    %v1322 = vmul.f32 %v703, %v703
    %v1323 = vmul.f32 %v706, %v706
    %v1324 = vmul.f32 %v711, %v711
    %v1325 = vmul.f32 %v714, %v714
    %v1326 = vmul.f32 %v719, %v719
    %v1327 = vmul.f32 %v722, %v722
    %v1328 = vmul.f32 %v727, %v727
    %v1329 = vmul.f32 %v730, %v730
    %v1330 = vmul.f32 %v735, %v735
    %v1331 = vmul.f32 %v738, %v738
    %v1332 = vmul.f32 %v743, %v743
    %v1333 = vmul.f32 %v746, %v746
    %v1334 = vmul.f32 %v751, %v751
    %v1335 = vmul.f32 %v754, %v754
    %v1336 = vmul.f32 %v759, %v759
    %v1337 = vmul.f32 %v762, %v762
    %v1338 = vmul.f32 %v767, %v767
    %v1339 = vmul.f32 %v770, %v770
    %v1340 = vmul.f32 %v775, %v775
    %v1341 = vmul.f32 %v778, %v778
    %v1342 = vmul.f32 %v783, %v783
    %v1343 = vmul.f32 %v786, %v786
    %v1344 = vmul.f32 %v791, %v791
    %v1345 = vmul.f32 %v794, %v794
    %v1346 = vmul.f32 %v799, %v799
    %v1347 = vmul.f32 %v802, %v802
    %v1348 = vmul.f32 %v807, %v807
    %v1349 = vmul.f32 %v810, %v810
    %v1350 = vmul.f32 %v815, %v815
    %v1351 = vmul.f32 %v818, %v818
    %v1352 = vmul.f32 %v823, %v823
    %v1353 = vmul.f32 %v826, %v826
    %v1354 = vmul.f32 %v831, %v831
    %v1355 = vmul.f32 %v834, %v834
    %v1356 = vsel %vm1158, %v1292, 0.0
    %v1357 = vsel %vm1158, %v1293, 0.0
    %v1358 = vadd.f32 %v1356, %v1357
    %v1359 = vsel %vm1158, %v1294, 0.0
    %v1360 = vadd.f32 %v1358, %v1359
    %v1361 = vsel %vm1158, %v1295, 0.0
    %v1362 = vadd.f32 %v1360, %v1361
    %v1363 = vsel %vm1158, %v1296, 0.0
    %v1364 = vadd.f32 %v1362, %v1363
    %v1365 = vsel %vm1158, %v1297, 0.0
    %v1366 = vadd.f32 %v1364, %v1365
    %v1367 = vsel %vm1158, %v1298, 0.0
    %v1368 = vadd.f32 %v1366, %v1367
    %v1369 = vsel %vm1158, %v1299, 0.0
    %v1370 = vadd.f32 %v1368, %v1369
    %v1371 = vsel %vm1158, %v1300, 0.0
    %v1372 = vadd.f32 %v1370, %v1371
    %v1373 = vsel %vm1158, %v1301, 0.0
    %v1374 = vadd.f32 %v1372, %v1373
    %v1375 = vsel %vm1158, %v1302, 0.0
    %v1376 = vadd.f32 %v1374, %v1375
    %v1377 = vsel %vm1158, %v1303, 0.0
    %v1378 = vadd.f32 %v1376, %v1377
    %v1379 = vsel %vm1158, %v1304, 0.0
    %v1380 = vadd.f32 %v1378, %v1379
    %v1381 = vsel %vm1158, %v1305, 0.0
    %v1382 = vadd.f32 %v1380, %v1381
    %v1383 = vsel %vm1158, %v1306, 0.0
    %v1384 = vadd.f32 %v1382, %v1383
    %v1385 = vsel %vm1158, %v1307, 0.0
    %v1386 = vadd.f32 %v1384, %v1385
    %v1387 = vsel %vm1158, %v1308, 0.0
    %v1388 = vadd.f32 %v1386, %v1387
    %v1389 = vsel %vm1158, %v1309, 0.0
    %v1390 = vadd.f32 %v1388, %v1389
    %v1391 = vsel %vm1158, %v1310, 0.0
    %v1392 = vadd.f32 %v1390, %v1391
    %v1393 = vsel %vm1158, %v1311, 0.0
    %v1394 = vadd.f32 %v1392, %v1393
    %v1395 = vsel %vm1158, %v1312, 0.0
    %v1396 = vadd.f32 %v1394, %v1395
    %v1397 = vsel %vm1158, %v1313, 0.0
    %v1398 = vadd.f32 %v1396, %v1397
    %v1399 = vsel %vm1158, %v1314, 0.0
    %v1400 = vadd.f32 %v1398, %v1399
    %v1401 = vsel %vm1158, %v1315, 0.0
    %v1402 = vadd.f32 %v1400, %v1401
    %v1403 = vsel %vm1158, %v1316, 0.0
    %v1404 = vadd.f32 %v1402, %v1403
    %v1405 = vsel %vm1158, %v1317, 0.0
    %v1406 = vadd.f32 %v1404, %v1405
    %v1407 = vsel %vm1158, %v1318, 0.0
    %v1408 = vadd.f32 %v1406, %v1407
    %v1409 = vsel %vm1158, %v1319, 0.0
    %v1410 = vadd.f32 %v1408, %v1409
    %v1411 = vsel %vm1158, %v1320, 0.0
    %v1412 = vadd.f32 %v1410, %v1411
    %v1413 = vsel %vm1158, %v1321, 0.0
    %v1414 = vadd.f32 %v1412, %v1413
    %v1415 = vsel %vm1158, %v1322, 0.0
    %v1416 = vadd.f32 %v1414, %v1415
    %v1417 = vsel %vm1158, %v1323, 0.0
    %v1418 = vadd.f32 %v1416, %v1417
    %v1419 = vsel %vm1158, %v1324, 0.0
    %v1420 = vadd.f32 %v1418, %v1419
    %v1421 = vsel %vm1158, %v1325, 0.0
    %v1422 = vadd.f32 %v1420, %v1421
    %v1423 = vsel %vm1158, %v1326, 0.0
    %v1424 = vadd.f32 %v1422, %v1423
    %v1425 = vsel %vm1158, %v1327, 0.0
    %v1426 = vadd.f32 %v1424, %v1425
    %v1427 = vsel %vm1158, %v1328, 0.0
    %v1428 = vadd.f32 %v1426, %v1427
    %v1429 = vsel %vm1158, %v1329, 0.0
    %v1430 = vadd.f32 %v1428, %v1429
    %v1431 = vsel %vm1158, %v1330, 0.0
    %v1432 = vadd.f32 %v1430, %v1431
    %v1433 = vsel %vm1158, %v1331, 0.0
    %v1434 = vadd.f32 %v1432, %v1433
    %v1435 = vsel %vm1158, %v1332, 0.0
    %v1436 = vadd.f32 %v1434, %v1435
    %v1437 = vsel %vm1158, %v1333, 0.0
    %v1438 = vadd.f32 %v1436, %v1437
    %v1439 = vsel %vm1158, %v1334, 0.0
    %v1440 = vadd.f32 %v1438, %v1439
    %v1441 = vsel %vm1158, %v1335, 0.0
    %v1442 = vadd.f32 %v1440, %v1441
    %v1443 = vsel %vm1158, %v1336, 0.0
    %v1444 = vadd.f32 %v1442, %v1443
    %v1445 = vsel %vm1158, %v1337, 0.0
    %v1446 = vadd.f32 %v1444, %v1445
    %v1447 = vsel %vm1158, %v1338, 0.0
    %v1448 = vadd.f32 %v1446, %v1447
    %v1449 = vsel %vm1158, %v1339, 0.0
    %v1450 = vadd.f32 %v1448, %v1449
    %v1451 = vsel %vm1158, %v1340, 0.0
    %v1452 = vadd.f32 %v1450, %v1451
    %v1453 = vsel %vm1158, %v1341, 0.0
    %v1454 = vadd.f32 %v1452, %v1453
    %v1455 = vsel %vm1158, %v1342, 0.0
    %v1456 = vadd.f32 %v1454, %v1455
    %v1457 = vsel %vm1158, %v1343, 0.0
    %v1458 = vadd.f32 %v1456, %v1457
    %v1459 = vsel %vm1158, %v1344, 0.0
    %v1460 = vadd.f32 %v1458, %v1459
    %v1461 = vsel %vm1158, %v1345, 0.0
    %v1462 = vadd.f32 %v1460, %v1461
    %v1463 = vsel %vm1158, %v1346, 0.0
    %v1464 = vadd.f32 %v1462, %v1463
    %v1465 = vsel %vm1158, %v1347, 0.0
    %v1466 = vadd.f32 %v1464, %v1465
    %v1467 = vsel %vm1158, %v1348, 0.0
    %v1468 = vadd.f32 %v1466, %v1467
    %v1469 = vsel %vm1158, %v1349, 0.0
    %v1470 = vadd.f32 %v1468, %v1469
    %v1471 = vsel %vm1158, %v1350, 0.0
    %v1472 = vadd.f32 %v1470, %v1471
    %v1473 = vsel %vm1158, %v1351, 0.0
    %v1474 = vadd.f32 %v1472, %v1473
    %v1475 = vsel %vm1158, %v1352, 0.0
    %v1476 = vadd.f32 %v1474, %v1475
    %v1477 = vsel %vm1158, %v1353, 0.0
    %v1478 = vadd.f32 %v1476, %v1477
    %v1479 = vsel %vm1158, %v1354, 0.0
    %v1480 = vadd.f32 %v1478, %v1479
    %v1481 = vsel %vm1158, %v1355, 0.0
    %v1482 = vadd.f32 %v1480, %v1481
    %v1483 = vrot.slane %v1482, 4
    %v1484 = vadd.f32 %v1482, %v1483
    %v1485 = vrot.slane %v1484, 2
    %v1486 = vadd.f32 %v1484, %v1485
    %v1487 = vrot.slane %v1486, 1
    %v1488 = vadd.f32 %v1486, %v1487
    %v1489 = vsel %vm541, %v1291, %v1488
    %vm1490 = vcmask 517120
    %1491 = vst.msk [vmem:[#allocation4] sm:$0x3] %vm1490, %v1489
    // Predicated region
    $region10: #{stem_conv.1} parent=1 // pred_check
      _
    $region11: #{stem_conv.1} parent=1 // pred_check_branch
      %1493 = sbr.rel (0) target = $region13
    $region12: #{stem_conv.1} parent=1 // pred_region
      %s1495 = ssub.s32 4096, 4096
      %1496 = vsyncadd [#allocation3], %s1495
      %s1497 = sshll.u32 [#allocation2], 4
      %s1498 = int_to_ptr.vmem [resolvable:$true] %s1497
      %1503 = dma.vmem_to_hbm [thread:$0]  %s1498, 4096, %s2, [#allocation3], 64, 64, 4
    $region13: #{stem_conv.1} parent=1 // pred_fallthru
      _
    // Predicated region
    $region14: #{stem_conv.1} parent=1 // pred_check
      _
    $region15: #{stem_conv.1} parent=1 // pred_check_branch
      %1505 = sbr.rel (0) target = $region17
    $region16: #{stem_conv.1} parent=1 // pred_region
      %s1507 = ssub.s32 32, 32
      %1508 = vsyncadd [#allocation5], %s1507
      %s1510 = sshll.u32 [#allocation4], 4
      %s1511 = int_to_ptr.vmem [resolvable:$true] %s1510
      %1513 = dma.vmem_to_hbm [thread:$0]  %s1511, 32, %s3, [#allocation5]
    $region17: #{stem_conv.1} parent=1 // pred_fallthru
      _
    // Predicated region
    $region18: #{stem_conv.1} parent=1 // pred_check
      _
    $region19: #{stem_conv.1} parent=1 // pred_check_branch
      %1515 = sbr.rel (0) target = $region21
    $region20: #{stem_conv.1} parent=1 // pred_region
      %1516 = dma.done [#allocation3], 4096
    $region21: #{stem_conv.1} parent=1 // pred_fallthru
      _
    // Predicated region
    $region22: #{stem_conv.1} parent=1 // pred_check
      _
    $region23: #{stem_conv.1} parent=1 // pred_check_branch
      %1518 = sbr.rel (0) target = $region25
    $region24: #{stem_conv.1} parent=1 // pred_region
      %1519 = dma.done [#allocation5], 32
    $region25: #{stem_conv.1} parent=1 // pred_fallthru
      _
    %1520 = vsyncpa [#allocation3], 1
    %1521 = vsyncpa [#allocation5], 1

</llo_original>
